<compile_context>
chip_gen: v7x
topology: tpu7x:2x2x1
jax: 0.10.0
libtpu: 0.0.40
codegen_flags: <defaults>
</compile_context>

<pallas_src>
import functools

import numpy as np
import jax
import jax.numpy as jnp
from jax.experimental import pallas as pl
from jax.experimental.pallas import tpu as pltpu

BN_EPS = 1e-5


def _round_up(x, m):
    return (x + m - 1) // m * m


# ----------------------------------------------------------------------------
# Pallas kernel: conv1 -> bn1 -> relu -> conv2 -> bn2 -> relu -> conv3,
# plus torch.max(view_score, dim=2) (max + first-max argmax over views).
# Layout inside the kernel: channels on sublanes, flattened B*N on lanes.
# ----------------------------------------------------------------------------
def _graspable_kernel(x_ref, w1_ref, g1_ref, be1_ref,
                      w2_ref, g2_ref, be2_ref,
                      w3_ref, b3_ref,
                      feat_ref, score_ref, inds_ref,
                      *, num_view):
    C, BN = x_ref.shape
    C2p = feat_ref.shape[0]
    inv_bn = jnp.float32(1.0 / BN)

    # ---- conv1 (1x1 conv == channel matmul over the flat B*N lane axis) ----
    # bias dropped: it is exactly cancelled by the train-mode BN mean subtract.
    h1 = jnp.dot(w1_ref[...], x_ref[...],
                 preferred_element_type=jnp.float32)          # (C, BN) f32

    # ---- bn1 (training-mode biased batch stats, single pass) + ReLU ----
    m1 = jnp.sum(h1, axis=1, keepdims=True) * inv_bn          # E[x]       (C,1)
    q1 = jnp.sum(h1 * h1, axis=1, keepdims=True) * inv_bn     # E[x^2]     (C,1)
    v1 = jnp.maximum(q1 - m1 * m1, 0.0)
    s1 = g1_ref[...] * jax.lax.rsqrt(v1 + BN_EPS)             # fused scale
    t1 = be1_ref[...] - m1 * s1                               # fused shift
    h1 = jnp.maximum(h1 * s1 + t1, 0.0).astype(jnp.bfloat16)

    # ---- conv2 (bias dropped, cancelled by bn2) ----
    h2 = jnp.dot(w2_ref[...], h1,
                 preferred_element_type=jnp.float32)          # (C2p, BN) f32

    # ---- bn2 + ReLU (padded channels are identically zero end-to-end) ----
    m2 = jnp.sum(h2, axis=1, keepdims=True) * inv_bn
    q2 = jnp.sum(h2 * h2, axis=1, keepdims=True) * inv_bn
    v2 = jnp.maximum(q2 - m2 * m2, 0.0)
    s2 = g2_ref[...] * jax.lax.rsqrt(v2 + BN_EPS)
    t2 = be2_ref[...] - m2 * s2
    h2 = jnp.maximum(h2 * s2 + t2, 0.0).astype(jnp.bfloat16)

    # ---- conv3 (bias kept, no BN after).  Output rows are pre-reordered by
    # the wrapper: [view_0 .. view_{V-1}, obj_0, obj_1, zero padding]. ----
    feat = jnp.dot(w3_ref[...], h2,
                   preferred_element_type=jnp.float32) + b3_ref[...]
    feat_ref[...] = feat

    # ---- torch.max(view_score, dim=2) while feat is still in registers:
    # mask the non-view rows to -inf, XLU reduce over sublanes, then a
    # first-max argmax via iota + where + min (torch tie-break behaviour). ----
    row = jax.lax.broadcasted_iota(jnp.int32, (C2p, BN), 0)
    is_view = row < num_view
    masked = jnp.where(is_view, feat, -jnp.inf)
    best = jnp.max(masked, axis=0, keepdims=True)             # (1, BN)
    hit = is_view & (masked == best)
    idx = jnp.min(jnp.where(hit, row, C2p), axis=0, keepdims=True)
    score_ref[...] = best
    inds_ref[...] = idx.astype(jnp.int32)


# ----------------------------------------------------------------------------
# Plain-JAX glue reproducing the graspnet utilities used by the forward pass.
# ----------------------------------------------------------------------------
def generate_grasp_views(n_views, phi=(np.sqrt(5.0) - 1.0) / 2.0, r=1.0):
    idxs = np.arange(n_views, dtype=np.float64)
    z = (2.0 * idxs + 1.0) / n_views - 1.0
    rad = np.sqrt(np.maximum(1.0 - z * z, 0.0))
    x = rad * np.cos(2.0 * idxs * np.pi * phi)
    y = rad * np.sin(2.0 * idxs * np.pi * phi)
    views = np.stack([x, y, z], axis=1) * r
    return jnp.asarray(views, dtype=jnp.float32)


def batch_viewpoint_params_to_matrix(batch_towards, batch_angle):
    axis_x = batch_towards
    zeros = jnp.zeros_like(axis_x[:, 0])
    ones = jnp.ones_like(zeros)
    axis_y = jnp.stack([-axis_x[:, 1], axis_x[:, 0], zeros], axis=-1)
    mask_y = jnp.linalg.norm(axis_y, axis=-1) == 0
    axis_y = axis_y.at[:, 1].set(jnp.where(mask_y, 1.0, axis_y[:, 1]))
    axis_x = axis_x / jnp.linalg.norm(axis_x, axis=-1, keepdims=True)
    axis_y = axis_y / jnp.linalg.norm(axis_y, axis=-1, keepdims=True)
    axis_z = jnp.cross(axis_x, axis_y)
    sin = jnp.sin(batch_angle)
    cos = jnp.cos(batch_angle)
    R1 = jnp.stack([ones, zeros, zeros, zeros, cos, -sin, zeros, sin, cos],
                   axis=-1).reshape(-1, 3, 3)
    R2 = jnp.stack([axis_x, axis_y, axis_z], axis=-1)
    return jnp.matmul(R2, R1)


# ----------------------------------------------------------------------------
# Parameter prep: bf16 matmul weights, padded/reordered conv2/conv3 channels.
# ----------------------------------------------------------------------------
def _prep_kernel_params(params, in_dim, num_view):
    C2 = 2 + num_view
    C2p = _round_up(C2, 8)

    w1 = params["w1"].astype(jnp.bfloat16)                       # (C, C)
    g1 = params["g1"].astype(jnp.float32)                        # (C, 1)
    be1 = params["be1"].astype(jnp.float32)

    # conv2 / bn2: pad output channels to C2p with zeros (zero rows stay zero
    # through bn2 + relu because gamma/beta padding is zero as well).
    w2 = jnp.zeros((C2p, in_dim), jnp.float32).at[:C2].set(
        params["w2"]).astype(jnp.bfloat16)
    g2 = jnp.zeros((C2p, 1), jnp.float32).at[:C2].set(params["g2"])
    be2 = jnp.zeros((C2p, 1), jnp.float32).at[:C2].set(params["be2"])

    # conv3: reorder OUTPUT rows so the num_view view channels come first and
    # the 2 objectness channels last, then pad both dims to C2p.  Input
    # columns keep conv2's original channel order.
    w3_r = jnp.concatenate([params["w3"][2:], params["w3"][:2]], axis=0)
    b3_r = jnp.concatenate([params["b3"][2:], params["b3"][:2]], axis=0)
    w3 = jnp.zeros((C2p, C2p), jnp.float32).at[:C2, :C2].set(
        w3_r).astype(jnp.bfloat16)
    b3 = jnp.zeros((C2p, 1), jnp.float32).at[:C2].set(b3_r)
    return w1, g1, be1, w2, g2, be2, w3, b3, C2p


def _vmem_limit_bytes(C, C2p, BN):
    # Un-tiled residency: bf16 input + weights, f32 outputs, plus f32 h1/h2
    # intermediates the compiler may spill, with generous DMA/scratch headroom.
    resident = (
        2 * C * BN                              # x (bf16)
        + 4 * (C2p * BN + 2 * BN)               # feat, score, inds
        + 2 * (C * C + C2p * C + C2p * C2p)     # weights (bf16)
        + 4 * 2 * (C + 2 * C2p + C2p)           # bn params + b3
        + 4 * (C * BN + C2p * BN)               # possible h1/h2 spills
    )
    return int(min(max(4 * resident, 8 * 1024 * 1024), 64 * 1024 * 1024))


# ----------------------------------------------------------------------------
# Wrapper mirroring GraspableDetection.forward(record=True).
# ----------------------------------------------------------------------------
def graspable_detection_forward(seed_xyz, seed_features, params, num_view):
    B, C, N = seed_features.shape
    V = num_view
    BN = B * N

    w1, g1, be1, w2, g2, be2, w3, b3, C2p = _prep_kernel_params(params, C, V)

    # Flatten batch into the lane axis: (B, C, N) -> (C, B*N), bf16 operands.
    x = jnp.transpose(seed_features, (1, 0, 2)).reshape(C, BN).astype(jnp.bfloat16)

    kernel = functools.partial(_graspable_kernel, num_view=V)
    feat_p, best, inds = pl.pallas_call(
        kernel,
        out_shape=(
            jax.ShapeDtypeStruct((C2p, BN), jnp.float32),   # conv3 out (padded, views first)
            jax.ShapeDtypeStruct((1, BN), jnp.float32),     # top view scores
            jax.ShapeDtypeStruct((1, BN), jnp.int32),       # top view indices
        ),
        in_specs=[pl.BlockSpec(memory_space=pltpu.MemorySpace.VMEM)] * 9,
        out_specs=(pl.BlockSpec(memory_space=pltpu.MemorySpace.VMEM),) * 3,
        compiler_params=pltpu.CompilerParams(
            vmem_limit_bytes=_vmem_limit_bytes(C, C2p, BN)),
    )(x, w1, g1, be1, w2, g2, be2, w3, b3)

    # Un-flatten / un-reorder / strip padding (cheap XLA reshapes).
    view_score = feat_p[:V].reshape(V, B, N).transpose(1, 2, 0)        # (B, N, V)
    objectness = feat_p[V:V + 2].reshape(2, B, N).transpose(1, 0, 2)   # (B, 2, N)
    top_scores = best.reshape(B, N)
    top_inds = inds.reshape(B, N)                                      # int32 (torch: int64)

    end_points = {}
    end_points["objectness_score"] = objectness
    end_points["view_score"] = view_score

    template_views = generate_grasp_views(V)                           # (V, 3)
    vp_xyz = jnp.take(template_views, top_inds, axis=0)                # (B, N, 3)
    vp_xyz_ = vp_xyz.reshape(-1, 3)
    batch_angle = jnp.zeros((vp_xyz_.shape[0],), dtype=vp_xyz.dtype)
    vp_rot = batch_viewpoint_params_to_matrix(-vp_xyz_, batch_angle).reshape(
        B, N, 3, 3)

    end_points["grasp_top_view_inds"] = top_inds
    end_points["grasp_top_view_score"] = top_scores
    end_points["grasp_top_view_xyz"] = vp_xyz
    end_points["grasp_top_view_rot"] = vp_rot
    return end_points


# ----------------------------------------------------------------------------
# Deterministic parameter initialization (shapes from __init__).
# b1/b2 are kept for module parity but never passed to the kernel: a bias
# added before training-mode BatchNorm is cancelled by the mean subtraction.
# ----------------------------------------------------------------------------
def init_params(key, in_dim, num_view):
    C2 = 2 + num_view
    ks = jax.random.split(key, 6)

    def u(k, shape, fan_in):
        bound = 1.0 / np.sqrt(fan_in)
        return jax.random.uniform(k, shape, jnp.float32, -bound, bound)

    return {
        "w1": u(ks[0], (in_dim, in_dim), in_dim),    # conv1.weight (k=1 squeezed)
        "b1": u(ks[1], (in_dim, 1), in_dim),         # conv1.bias (cancelled by bn1)
        "w2": u(ks[2], (C2, in_dim), in_dim),        # conv2.weight
        "b2": u(ks[3], (C2, 1), in_dim),             # conv2.bias (cancelled by bn2)
        "w3": u(ks[4], (C2, C2), C2),                # conv3.weight
        "b3": u(ks[5], (C2, 1), C2),                 # conv3.bias
        "g1": jnp.ones((in_dim, 1), jnp.float32),    # bn1.weight
        "be1": jnp.zeros((in_dim, 1), jnp.float32),  # bn1.bias
        "g2": jnp.ones((C2, 1), jnp.float32),        # bn2.weight
        "be2": jnp.zeros((C2, 1), jnp.float32),      # bn2.bias
    }


if __name__ == "__main__":
    B = 2
    num_seed = 256
    seed_feature_dim = 32
    num_view = 12

    key = jax.random.PRNGKey(0)
    kx, kf, kp = jax.random.split(key, 3)
    seed_xyz = jax.random.normal(kx, (B, num_seed, 3), jnp.float32)
    seed_features = jax.random.normal(kf, (B, seed_feature_dim, num_seed), jnp.float32)
    params = init_params(kp, seed_feature_dim, num_view)

    end_points = graspable_detection_forward(seed_xyz, seed_features, params, num_view)
    jax.block_until_ready(end_points)
    print("KERNEL_OK")
</pallas_src>

<mosaic_0001>
module attributes {stable_mosaic.version = 11 : i64} {
  func.func @_graspable_kernel(%arg0: memref<32x512xbf16, #tpu.memory_space<vmem>>, %arg1: memref<32x32xbf16, #tpu.memory_space<vmem>>, %arg2: memref<32x1xf32, #tpu.memory_space<vmem>>, %arg3: memref<32x1xf32, #tpu.memory_space<vmem>>, %arg4: memref<16x32xbf16, #tpu.memory_space<vmem>>, %arg5: memref<16x1xf32, #tpu.memory_space<vmem>>, %arg6: memref<16x1xf32, #tpu.memory_space<vmem>>, %arg7: memref<16x16xbf16, #tpu.memory_space<vmem>>, %arg8: memref<16x1xf32, #tpu.memory_space<vmem>>, %arg9: memref<16x512xf32, #tpu.memory_space<vmem>>, %arg10: memref<1x512xf32, #tpu.memory_space<vmem>>, %arg11: memref<1x512xi32, #tpu.memory_space<vmem>>) attributes {dimension_semantics = [], scalar_prefetch = 0 : i64, scratch_operands = 0 : i64, tpu.core_type = #tpu.core_type<tc>} {
    %c0 = arith.constant 0 : index
    %c0_0 = arith.constant 0 : index
    %0 = vector.load %arg1[%c0, %c0_0] : memref<32x32xbf16, #tpu.memory_space<vmem>>, vector<32x32xbf16>
    %c0_1 = arith.constant 0 : index
    %c0_2 = arith.constant 0 : index
    %1 = vector.load %arg0[%c0_1, %c0_2] : memref<32x512xbf16, #tpu.memory_space<vmem>>, vector<32x512xbf16>
    %cst = arith.constant dense<0.000000e+00> : vector<32x512xf32>
    %2 = tpu.matmul %0, %1, %cst {dimension_numbers = #tpu.dot_dimension_numbers<[1], [0], [0], [1], [0, 0, 1, 1], [], []>} : vector<32x32xbf16>, vector<32x512xbf16>, vector<32x512xf32> -> vector<32x512xf32>
    %cst_3 = arith.constant dense<0.000000e+00> : vector<32xf32>
    %3 = vector.multi_reduction <add>, %2, %cst_3 [1] : vector<32x512xf32> to vector<32xf32>
    %4 = vector.shape_cast %3 : vector<32xf32> to vector<32x1xf32>
    %cst_4 = arith.constant 0.001953125 : f32
    %5 = vector.broadcast %cst_4 : f32 to vector<32x1xf32>
    %6 = arith.mulf %4, %5 : vector<32x1xf32>
    %7 = arith.mulf %2, %2 : vector<32x512xf32>
    %cst_5 = arith.constant dense<0.000000e+00> : vector<32xf32>
    %8 = vector.multi_reduction <add>, %7, %cst_5 [1] : vector<32x512xf32> to vector<32xf32>
    %9 = vector.shape_cast %8 : vector<32xf32> to vector<32x1xf32>
    %cst_6 = arith.constant 0.001953125 : f32
    %10 = vector.broadcast %cst_6 : f32 to vector<32x1xf32>
    %11 = arith.mulf %9, %10 : vector<32x1xf32>
    %12 = arith.mulf %6, %6 : vector<32x1xf32>
    %13 = arith.subf %11, %12 : vector<32x1xf32>
    %cst_7 = arith.constant 0.000000e+00 : f32
    %14 = vector.broadcast %cst_7 : f32 to vector<32x1xf32>
    %15 = arith.maximumf %13, %14 : vector<32x1xf32>
    %c0_8 = arith.constant 0 : index
    %c0_9 = arith.constant 0 : index
    %16 = vector.load %arg2[%c0_8, %c0_9] : memref<32x1xf32, #tpu.memory_space<vmem>>, vector<32x1xf32>
    %cst_10 = arith.constant 9.99999974E-6 : f32
    %17 = vector.broadcast %cst_10 : f32 to vector<32x1xf32>
    %18 = arith.addf %15, %17 : vector<32x1xf32>
    %19 = math.rsqrt %18 : vector<32x1xf32>
    %20 = arith.mulf %16, %19 : vector<32x1xf32>
    %c0_11 = arith.constant 0 : index
    %c0_12 = arith.constant 0 : index
    %21 = vector.load %arg3[%c0_11, %c0_12] : memref<32x1xf32, #tpu.memory_space<vmem>>, vector<32x1xf32>
    %22 = arith.mulf %6, %20 : vector<32x1xf32>
    %23 = arith.subf %21, %22 : vector<32x1xf32>
    %24 = vector.broadcast %20 : vector<32x1xf32> to vector<32x512xf32>
    %25 = arith.mulf %2, %24 : vector<32x512xf32>
    %26 = vector.broadcast %23 : vector<32x1xf32> to vector<32x512xf32>
    %27 = arith.addf %25, %26 : vector<32x512xf32>
    %cst_13 = arith.constant 0.000000e+00 : f32
    %28 = vector.broadcast %cst_13 : f32 to vector<32x512xf32>
    %29 = arith.maximumf %27, %28 : vector<32x512xf32>
    %30 = arith.truncf %29 : vector<32x512xf32> to vector<32x512xbf16>
    %c0_14 = arith.constant 0 : index
    %c0_15 = arith.constant 0 : index
    %31 = vector.load %arg4[%c0_14, %c0_15] : memref<16x32xbf16, #tpu.memory_space<vmem>>, vector<16x32xbf16>
    %cst_16 = arith.constant dense<0.000000e+00> : vector<16x512xf32>
    %32 = tpu.matmul %31, %30, %cst_16 {dimension_numbers = #tpu.dot_dimension_numbers<[1], [0], [0], [1], [0, 0, 1, 1], [], []>} : vector<16x32xbf16>, vector<32x512xbf16>, vector<16x512xf32> -> vector<16x512xf32>
    %cst_17 = arith.constant dense<0.000000e+00> : vector<16xf32>
    %33 = vector.multi_reduction <add>, %32, %cst_17 [1] : vector<16x512xf32> to vector<16xf32>
    %34 = vector.shape_cast %33 : vector<16xf32> to vector<16x1xf32>
    %cst_18 = arith.constant 0.001953125 : f32
    %35 = vector.broadcast %cst_18 : f32 to vector<16x1xf32>
    %36 = arith.mulf %34, %35 : vector<16x1xf32>
    %37 = arith.mulf %32, %32 : vector<16x512xf32>
    %cst_19 = arith.constant dense<0.000000e+00> : vector<16xf32>
    %38 = vector.multi_reduction <add>, %37, %cst_19 [1] : vector<16x512xf32> to vector<16xf32>
    %39 = vector.shape_cast %38 : vector<16xf32> to vector<16x1xf32>
    %cst_20 = arith.constant 0.001953125 : f32
    %40 = vector.broadcast %cst_20 : f32 to vector<16x1xf32>
    %41 = arith.mulf %39, %40 : vector<16x1xf32>
    %42 = arith.mulf %36, %36 : vector<16x1xf32>
    %43 = arith.subf %41, %42 : vector<16x1xf32>
    %cst_21 = arith.constant 0.000000e+00 : f32
    %44 = vector.broadcast %cst_21 : f32 to vector<16x1xf32>
    %45 = arith.maximumf %43, %44 : vector<16x1xf32>
    %c0_22 = arith.constant 0 : index
    %c0_23 = arith.constant 0 : index
    %46 = vector.load %arg5[%c0_22, %c0_23] : memref<16x1xf32, #tpu.memory_space<vmem>>, vector<16x1xf32>
    %cst_24 = arith.constant 9.99999974E-6 : f32
    %47 = vector.broadcast %cst_24 : f32 to vector<16x1xf32>
    %48 = arith.addf %45, %47 : vector<16x1xf32>
    %49 = math.rsqrt %48 : vector<16x1xf32>
    %50 = arith.mulf %46, %49 : vector<16x1xf32>
    %c0_25 = arith.constant 0 : index
    %c0_26 = arith.constant 0 : index
    %51 = vector.load %arg6[%c0_25, %c0_26] : memref<16x1xf32, #tpu.memory_space<vmem>>, vector<16x1xf32>
    %52 = arith.mulf %36, %50 : vector<16x1xf32>
    %53 = arith.subf %51, %52 : vector<16x1xf32>
    %54 = vector.broadcast %50 : vector<16x1xf32> to vector<16x512xf32>
    %55 = arith.mulf %32, %54 : vector<16x512xf32>
    %56 = vector.broadcast %53 : vector<16x1xf32> to vector<16x512xf32>
    %57 = arith.addf %55, %56 : vector<16x512xf32>
    %cst_27 = arith.constant 0.000000e+00 : f32
    %58 = vector.broadcast %cst_27 : f32 to vector<16x512xf32>
    %59 = arith.maximumf %57, %58 : vector<16x512xf32>
    %60 = arith.truncf %59 : vector<16x512xf32> to vector<16x512xbf16>
    %c0_28 = arith.constant 0 : index
    %c0_29 = arith.constant 0 : index
    %61 = vector.load %arg7[%c0_28, %c0_29] : memref<16x16xbf16, #tpu.memory_space<vmem>>, vector<16x16xbf16>
    %cst_30 = arith.constant dense<0.000000e+00> : vector<16x512xf32>
    %62 = tpu.matmul %61, %60, %cst_30 {dimension_numbers = #tpu.dot_dimension_numbers<[1], [0], [0], [1], [0, 0, 1, 1], [], []>} : vector<16x16xbf16>, vector<16x512xbf16>, vector<16x512xf32> -> vector<16x512xf32>
    %c0_31 = arith.constant 0 : index
    %c0_32 = arith.constant 0 : index
    %63 = vector.load %arg8[%c0_31, %c0_32] : memref<16x1xf32, #tpu.memory_space<vmem>>, vector<16x1xf32>
    %64 = vector.broadcast %63 : vector<16x1xf32> to vector<16x512xf32>
    %65 = arith.addf %62, %64 : vector<16x512xf32>
    %c0_33 = arith.constant 0 : index
    %c0_34 = arith.constant 0 : index
    %66 = vector.load %arg9[%c0_33, %c0_34] : memref<16x512xf32, #tpu.memory_space<vmem>>, vector<16x512xf32>
    tpu.vector_store %arg9[%c0_33, %c0_34], %65 {strides = array<i32>} : memref<16x512xf32, #tpu.memory_space<vmem>>, vector<16x512xf32>,
    %67 = tpu.iota {dimensions = array<i32: 0>} : vector<16x512xi32>
    %c12_i32 = arith.constant 12 : i32
    %68 = vector.broadcast %c12_i32 : i32 to vector<16x512xi32>
    %69 = arith.cmpi slt, %67, %68 : vector<16x512xi32>
    %cst_35 = arith.constant 0xFF800000 : f32
    %70 = vector.broadcast %cst_35 : f32 to vector<16x512xf32>
    %71 = arith.select %69, %65, %70 : vector<16x512xi1>, vector<16x512xf32>
    %cst_36 = arith.constant dense<0xFF800000> : vector<512xf32>
    %72 = vector.multi_reduction <maximumf>, %71, %cst_36 [0] : vector<16x512xf32> to vector<512xf32>
    %73 = vector.shape_cast %72 : vector<512xf32> to vector<1x512xf32>
    %74 = vector.broadcast %73 : vector<1x512xf32> to vector<16x512xf32>
    %75 = arith.cmpf oeq, %71, %74 : vector<16x512xf32>
    %76 = arith.andi %69, %75 : vector<16x512xi1>
    %c16_i32 = arith.constant 16 : i32
    %77 = vector.broadcast %c16_i32 : i32 to vector<16x512xi32>
    %78 = arith.select %76, %67, %77 : vector<16x512xi1>, vector<16x512xi32>
    %cst_37 = arith.constant dense<2147483647> : vector<512xi32>
    %79 = vector.multi_reduction <minsi>, %78, %cst_37 [0] : vector<16x512xi32> to vector<512xi32>
    %80 = vector.shape_cast %79 : vector<512xi32> to vector<1x512xi32>
    %c0_38 = arith.constant 0 : index
    %c0_39 = arith.constant 0 : index
    %81 = vector.load %arg10[%c0_38, %c0_39] : memref<1x512xf32, #tpu.memory_space<vmem>>, vector<1x512xf32>
    tpu.vector_store %arg10[%c0_38, %c0_39], %73 {strides = array<i32>} : memref<1x512xf32, #tpu.memory_space<vmem>>, vector<1x512xf32>,
    %c0_40 = arith.constant 0 : index
    %c0_41 = arith.constant 0 : index
    %82 = vector.load %arg11[%c0_40, %c0_41] : memref<1x512xi32, #tpu.memory_space<vmem>>, vector<1x512xi32>
    tpu.vector_store %arg11[%c0_40, %c0_41], %80 {strides = array<i32>} : memref<1x512xi32, #tpu.memory_space<vmem>>, vector<1x512xi32>,
    return
  }
}

</mosaic_0001>

<llo_original>
// kernel: tpu_custom_call.1
$region0: #{tpu_custom_call.1}
  #allocation0 [shape = 'u32[]', space=smem, size = 0x4, offset = 0x4, fixed_abs, tag = 'smem constant byte address 0x4 - core index']
  #allocation1 [shape = 'u32[144,128]{1,0:T(1,128)}', space=vmem, size = 0x12000, scoped, tag = 'internal scratch']
  %s0 = inlined_call_operand.vmem [shape: bf16[32,512], index: 0, kind: input, shape index: {}]
  %s1 = inlined_call_operand.vmem [shape: bf16[32,32], index: 1, kind: input, shape index: {}]
  %s2 = inlined_call_operand.vmem [shape: f32[32,1], index: 2, kind: input, shape index: {}]
  %s3 = inlined_call_operand.vmem [shape: f32[32,1], index: 3, kind: input, shape index: {}]
  %s4 = inlined_call_operand.vmem [shape: bf16[16,32], index: 4, kind: input, shape index: {}]
  %s5 = inlined_call_operand.vmem [shape: f32[16,1], index: 5, kind: input, shape index: {}]
  %s6 = inlined_call_operand.vmem [shape: f32[16,1], index: 6, kind: input, shape index: {}]
  %s7 = inlined_call_operand.vmem [shape: bf16[16,16], index: 7, kind: input, shape index: {}]
  %s8 = inlined_call_operand.vmem [shape: f32[16,1], index: 8, kind: input, shape index: {}]
  %s9 = inlined_call_operand.hbm [shape: f32[16,512], index: 9, kind: output, shape index: {0}]
  %s10 = inlined_call_operand.hbm [shape: f32[1,512], index: 10, kind: output, shape index: {1}]
  %s11 = inlined_call_operand.hbm [shape: s32[1,512], index: 11, kind: output, shape index: {2}]
  %12 = xla_tuple %s9, %s10, %s11
  %s13 = sld [smem:[#allocation0]]
  $region62: #{tpu_custom_call.1} parent=0
    _
  %s15 = ssub.s32 1, %s13
  %s16 = scalar_select 0, %s15, %s13
  $region1: #{tpu_custom_call.1} parent=0
    #allocation2 [shape = 'u8[32768]{0}', space=vmem, size = 0x8000, scoped, tag = 'output window, operand 0, single buffered']
    #allocation3 [shape = 's32[1]{0}', space=sflag, size = 0x4, scoped, tag = 'scoped memory for tpu_custom_call.1']
    #allocation4 [shape = 'u8[2048]{0}', space=vmem, size = 0x800, scoped, tag = 'output window, operand 1, single buffered']
    #allocation5 [shape = 's32[1]{0}', space=sflag, size = 0x4, scoped, tag = 'scoped memory for tpu_custom_call.1']
    #allocation6 [shape = 'u8[2048]{0}', space=vmem, size = 0x800, scoped, tag = 'output window, operand 2, single buffered']
    %17 = vsyncpa [#allocation3], 0
    %18 = vsyncpa [#allocation5], 0
    // Predicated region
    $region2: #{tpu_custom_call.1} parent=1 // pred_check
      _
    $region3: #{tpu_custom_call.1} parent=1 // pred_check_branch
      %20 = sbr.rel (0) target = $region5
    $region4: #{tpu_custom_call.1} parent=1 // pred_region
      _
    $region5: #{tpu_custom_call.1} parent=1 // pred_fallthru
      _
    // Predicated region
    $region6: #{tpu_custom_call.1} parent=1 // pred_check
      _
    $region7: #{tpu_custom_call.1} parent=1 // pred_check_branch
      %22 = sbr.rel (0) target = $region9
    $region8: #{tpu_custom_call.1} parent=1 // pred_region
      _
    $region9: #{tpu_custom_call.1} parent=1 // pred_fallthru
      _
    // Predicated region
    $region10: #{tpu_custom_call.1} parent=1 // pred_check
      _
    $region11: #{tpu_custom_call.1} parent=1 // pred_check_branch
      %24 = sbr.rel (0) target = $region13
    $region12: #{tpu_custom_call.1} parent=1 // pred_region
      _
    $region13: #{tpu_custom_call.1} parent=1 // pred_fallthru
      _
    // Predicated region
    $region14: #{tpu_custom_call.1} parent=1 // pred_check
      _
    $region15: #{tpu_custom_call.1} parent=1 // pred_check_branch
      %26 = sbr.rel (0) target = $region17
    $region16: #{tpu_custom_call.1} parent=1 // pred_region
      _
    $region17: #{tpu_custom_call.1} parent=1 // pred_fallthru
      _
    // Predicated region
    $region18: #{tpu_custom_call.1} parent=1 // pred_check
      _
    $region19: #{tpu_custom_call.1} parent=1 // pred_check_branch
      %28 = sbr.rel (0) target = $region21
    $region20: #{tpu_custom_call.1} parent=1 // pred_region
      _
    $region21: #{tpu_custom_call.1} parent=1 // pred_fallthru
      _
    // Predicated region
    $region22: #{tpu_custom_call.1} parent=1 // pred_check
      _
    $region23: #{tpu_custom_call.1} parent=1 // pred_check_branch
      %30 = sbr.rel (0) target = $region25
    $region24: #{tpu_custom_call.1} parent=1 // pred_region
      _
    $region25: #{tpu_custom_call.1} parent=1 // pred_fallthru
      _
    // Predicated region
    $region26: #{tpu_custom_call.1} parent=1 // pred_check
      _
    $region27: #{tpu_custom_call.1} parent=1 // pred_check_branch
      %32 = sbr.rel (0) target = $region29
    $region28: #{tpu_custom_call.1} parent=1 // pred_region
      _
    $region29: #{tpu_custom_call.1} parent=1 // pred_fallthru
      _
    // Predicated region
    $region30: #{tpu_custom_call.1} parent=1 // pred_check
      _
    $region31: #{tpu_custom_call.1} parent=1 // pred_check_branch
      %34 = sbr.rel (0) target = $region33
    $region32: #{tpu_custom_call.1} parent=1 // pred_region
      _
    $region33: #{tpu_custom_call.1} parent=1 // pred_fallthru
      _
    // Predicated region
    $region34: #{tpu_custom_call.1} parent=1 // pred_check
      _
    $region35: #{tpu_custom_call.1} parent=1 // pred_check_branch
      %36 = sbr.rel (0) target = $region37
    $region36: #{tpu_custom_call.1} parent=1 // pred_region
      _
    $region37: #{tpu_custom_call.1} parent=1 // pred_fallthru
      _
    %v38 = vld [vmem:[%s1] sm:$0xf]
    %v39 = vld [vmem:[%s1 + $0x4] sm:$0xf]
    %v40 = vld [vmem:[%s1 + $0x8] sm:$0xf]
    %v41 = vld [vmem:[%s1 + $0xc] sm:$0xf]
    %v42 = vld [vmem:[%s0] sm:$0xff]
    %v43 = vld [vmem:[%s0 + $0x8] sm:$0xff]
    %v44 = vld [vmem:[%s0 + $0x10] sm:$0xff]
    %v45 = vld [vmem:[%s0 + $0x18] sm:$0xff]
    %v46 = vld [vmem:[%s0 + $0x20] sm:$0xff]
    %v47 = vld [vmem:[%s0 + $0x28] sm:$0xff]
    %v48 = vld [vmem:[%s0 + $0x30] sm:$0xff]
    %v49 = vld [vmem:[%s0 + $0x38] sm:$0xff]
    %v54 = vunpack.c.l.b16 %v38
    %v55 = vunpack.c.l.b16 %v39
    %v56 = vunpack.c.l.b16 %v40
    %v57 = vunpack.c.l.b16 %v41
    %v58 = vpack.c.b16 %v55, %v54
    %v59 = vpack.c.b16 %v57, %v56
    %v68 = vunpack.c.l.b16 %v42
    %v69 = vunpack.c.h.b16 %v42
    %v70 = vunpack.c.l.b16 %v43
    %v71 = vunpack.c.h.b16 %v43
    %v72 = vunpack.c.l.b16 %v44
    %v73 = vunpack.c.h.b16 %v44
    %v74 = vunpack.c.l.b16 %v45
    %v75 = vunpack.c.h.b16 %v45
    %v76 = vunpack.c.l.b16 %v46
    %v77 = vunpack.c.h.b16 %v46
    %v78 = vunpack.c.l.b16 %v47
    %v79 = vunpack.c.h.b16 %v47
    %v80 = vunpack.c.l.b16 %v48
    %v81 = vunpack.c.h.b16 %v48
    %v82 = vunpack.c.l.b16 %v49
    %v83 = vunpack.c.h.b16 %v49
    %v84 = vpack.c.b16 %v72, %v68
    %v85 = vpack.c.b16 %v73, %v69
    %v86 = vpack.c.b16 %v74, %v70
    %v87 = vpack.c.b16 %v75, %v71
    %v88 = vpack.c.b16 %v80, %v76
    %v89 = vpack.c.b16 %v81, %v77
    %v90 = vpack.c.b16 %v82, %v78
    %v91 = vpack.c.b16 %v83, %v79
    %vm100 = vcmask 261120
    %v102 = vsel %vm100, %v58, 0
    %v105 = vsel %vm100, %v59, 0
    %107 = vmatprep.subr.bf16.mxu0 %v85
    %108 = vmatpush1.bf16.msra.mxu0 %v84
    %109 = vmatprep.subr.bf16.mxu0 %v89
    %110 = vmatpush1.bf16.msra.mxu0 %v88
    %111 = vmatprep.subr.bf16.mxu0 0
    %112 = vmatpush1.bf16.msra.mxu0 0
    %113 = vmatprep.subr.bf16.mxu0 0
    %114 = vmatpush1.bf16.msra.mxu0 0
    %115 = vmatprep.subr.bf16.mxu0 0
    %116 = vmatpush1.bf16.msra.mxu0 0
    %117 = vmatprep.subr.bf16.mxu0 0
    %118 = vmatpush1.bf16.msra.mxu0 0
    %119 = vmatprep.subr.bf16.mxu0 0
    %120 = vmatpush1.bf16.msra.mxu0 0
    %121 = vmatprep.subr.bf16.mxu0 0
    %122 = vmatpush1.bf16.msra.mxu0 0
    %123 = vmatprep.subr.bf16.mxu0 0
    %124 = vmatpush1.bf16.msra.mxu0 0
    %125 = vmatprep.subr.bf16.mxu0 0
    %126 = vmatpush1.bf16.msra.mxu0 0
    %127 = vmatprep.subr.bf16.mxu0 0
    %128 = vmatpush1.bf16.msra.mxu0 0
    %129 = vmatprep.subr.bf16.mxu0 0
    %130 = vmatpush1.bf16.msra.mxu0 0
    %131 = vmatprep.subr.bf16.mxu0 0
    %132 = vmatpush1.bf16.msra.mxu0 0
    %133 = vmatprep.subr.bf16.mxu0 0
    %134 = vmatpush1.bf16.msra.mxu0 0
    %135 = vmatprep.subr.bf16.mxu0 0
    %136 = vmatpush1.bf16.msra.mxu0 0
    %137 = vmatprep.subr.bf16.mxu0 0
    %138 = vmatpush1.bf16.msra.mxu0 0
    %139 = vmatprep.mubr.bf16.mxu0 0
    %140 = vmatmul.mubr.bf16.gmra.mrb[0].mxu0 %v102
    %v141 = vpop.f32.mrb[0].mxu0
    %v142 = vadd.f32 0.0, %v141
    %v143 = vpop.f32.mrb[0].mxu0
    %v144 = vadd.f32 0.0, %v143
    %v145 = vpop.f32.mrb[0].mxu0
    %v146 = vadd.f32 0.0, %v145
    %v147 = vpop.f32.mrb[0].mxu0
    %v148 = vadd.f32 0.0, %v147
    %149 = vmatprep.mubr.bf16.mxu0 0
    %150 = vmatmul.mubr.bf16.gmra.mrb[0].mxu0 %v105
    %v151 = vpop.f32.mrb[0].mxu0
    %v152 = vadd.f32 0.0, %v151
    %v153 = vpop.f32.mrb[0].mxu0
    %v154 = vadd.f32 0.0, %v153
    %v155 = vpop.f32.mrb[0].mxu0
    %v156 = vadd.f32 0.0, %v155
    %v157 = vpop.f32.mrb[0].mxu0
    %v158 = vadd.f32 0.0, %v157
    %159 = vdwg.mxu0
    %160 = vmatprep.subr.bf16.mxu0 %v87
    %161 = vmatpush1.bf16.msra.mxu0 %v86
    %162 = vmatprep.subr.bf16.mxu0 %v91
    %163 = vmatpush1.bf16.msra.mxu0 %v90
    %164 = vmatprep.subr.bf16.mxu0 0
    %165 = vmatpush1.bf16.msra.mxu0 0
    %166 = vmatprep.subr.bf16.mxu0 0
    %167 = vmatpush1.bf16.msra.mxu0 0
    %168 = vmatprep.subr.bf16.mxu0 0
    %169 = vmatpush1.bf16.msra.mxu0 0
    %170 = vmatprep.subr.bf16.mxu0 0
    %171 = vmatpush1.bf16.msra.mxu0 0
    %172 = vmatprep.subr.bf16.mxu0 0
    %173 = vmatpush1.bf16.msra.mxu0 0
    %174 = vmatprep.subr.bf16.mxu0 0
    %175 = vmatpush1.bf16.msra.mxu0 0
    %176 = vmatprep.subr.bf16.mxu0 0
    %177 = vmatpush1.bf16.msra.mxu0 0
    %178 = vmatprep.subr.bf16.mxu0 0
    %179 = vmatpush1.bf16.msra.mxu0 0
    %180 = vmatprep.subr.bf16.mxu0 0
    %181 = vmatpush1.bf16.msra.mxu0 0
    %182 = vmatprep.subr.bf16.mxu0 0
    %183 = vmatpush1.bf16.msra.mxu0 0
    %184 = vmatprep.subr.bf16.mxu0 0
    %185 = vmatpush1.bf16.msra.mxu0 0
    %186 = vmatprep.subr.bf16.mxu0 0
    %187 = vmatpush1.bf16.msra.mxu0 0
    %188 = vmatprep.subr.bf16.mxu0 0
    %189 = vmatpush1.bf16.msra.mxu0 0
    %190 = vmatprep.subr.bf16.mxu0 0
    %191 = vmatpush1.bf16.msra.mxu0 0
    %192 = vmatprep.mubr.bf16.mxu0 0
    %193 = vmatmul.mubr.bf16.gmra.mrb[0].mxu0 %v102
    %v194 = vpop.f32.mrb[0].mxu0
    %v195 = vadd.f32 0.0, %v194
    %v196 = vpop.f32.mrb[0].mxu0
    %v197 = vadd.f32 0.0, %v196
    %v198 = vpop.f32.mrb[0].mxu0
    %v199 = vadd.f32 0.0, %v198
    %v200 = vpop.f32.mrb[0].mxu0
    %v201 = vadd.f32 0.0, %v200
    %202 = vmatprep.mubr.bf16.mxu0 0
    %203 = vmatmul.mubr.bf16.gmra.mrb[0].mxu0 %v105
    %v204 = vpop.f32.mrb[0].mxu0
    %v205 = vadd.f32 0.0, %v204
    %v206 = vpop.f32.mrb[0].mxu0
    %v207 = vadd.f32 0.0, %v206
    %v208 = vpop.f32.mrb[0].mxu0
    %v209 = vadd.f32 0.0, %v208
    %v210 = vpop.f32.mrb[0].mxu0
    %v211 = vadd.f32 0.0, %v210
    %212 = vdwg.mxu0
    %v213 = vadd.f32 %v142, %v144
    %v214 = vadd.f32 %v213, %v195
    %v215 = vadd.f32 %v214, %v197
    %216 = vadd.xlane.f32.xlu0 %v215
    %v217 = vpop.xlane.xlu0 %216
    %v218 = vadd.f32 %v146, %v148
    %v219 = vadd.f32 %v218, %v199
    %v220 = vadd.f32 %v219, %v201
    %221 = vadd.xlane.f32.xlu0 %v220
    %v222 = vpop.xlane.xlu0 %221
    %v223 = vadd.f32 %v152, %v154
    %v224 = vadd.f32 %v223, %v205
    %v225 = vadd.f32 %v224, %v207
    %226 = vadd.xlane.f32.xlu0 %v225
    %v227 = vpop.xlane.xlu0 %226
    %v228 = vadd.f32 %v156, %v158
    %v229 = vadd.f32 %v228, %v209
    %v230 = vadd.f32 %v229, %v211
    %231 = vadd.xlane.f32.xlu0 %v230
    %v232 = vpop.xlane.xlu0 %231
    %v233 = vmul.f32 %v217, 0.001953125
    %v234 = vmul.f32 %v222, 0.001953125
    %v235 = vmul.f32 %v227, 0.001953125
    %v236 = vmul.f32 %v232, 0.001953125
    %v237 = vmul.f32 %v142, %v142
    %v238 = vmul.f32 %v144, %v144
    %v239 = vmul.f32 %v195, %v195
    %v240 = vmul.f32 %v197, %v197
    %v241 = vmul.f32 %v146, %v146
    %v242 = vmul.f32 %v148, %v148
    %v243 = vmul.f32 %v199, %v199
    %v244 = vmul.f32 %v201, %v201
    %v245 = vmul.f32 %v152, %v152
    %v246 = vmul.f32 %v154, %v154
    %v247 = vmul.f32 %v205, %v205
    %v248 = vmul.f32 %v207, %v207
    %v249 = vmul.f32 %v156, %v156
    %v250 = vmul.f32 %v158, %v158
    %v251 = vmul.f32 %v209, %v209
    %v252 = vmul.f32 %v211, %v211
    %v253 = vadd.f32 %v237, %v238
    %v254 = vadd.f32 %v253, %v239
    %v255 = vadd.f32 %v254, %v240
    %256 = vadd.xlane.f32.xlu0 %v255
    %v257 = vpop.xlane.xlu0 %256
    %v258 = vadd.f32 %v241, %v242
    %v259 = vadd.f32 %v258, %v243
    %v260 = vadd.f32 %v259, %v244
    %261 = vadd.xlane.f32.xlu0 %v260
    %v262 = vpop.xlane.xlu0 %261
    %v263 = vadd.f32 %v245, %v246
    %v264 = vadd.f32 %v263, %v247
    %v265 = vadd.f32 %v264, %v248
    %266 = vadd.xlane.f32.xlu0 %v265
    %v267 = vpop.xlane.xlu0 %266
    %v268 = vadd.f32 %v249, %v250
    %v269 = vadd.f32 %v268, %v251
    %v270 = vadd.f32 %v269, %v252
    %271 = vadd.xlane.f32.xlu0 %v270
    %v272 = vpop.xlane.xlu0 %271
    %v273 = vmul.f32 %v257, 0.001953125
    %v274 = vmul.f32 %v262, 0.001953125
    %v275 = vmul.f32 %v267, 0.001953125
    %v276 = vmul.f32 %v272, 0.001953125
    %v277 = vmul.f32 %v233, %v233
    %v278 = vmul.f32 %v234, %v234
    %v279 = vmul.f32 %v235, %v235
    %v280 = vmul.f32 %v236, %v236
    %v281 = vsub.f32 %v273, %v277
    %v282 = vsub.f32 %v274, %v278
    %v283 = vsub.f32 %v275, %v279
    %v284 = vsub.f32 %v276, %v280
    %v285 = vmax.f32 %v281, 0.0
    %v286 = vmax.f32 %v282, 0.0
    %v287 = vmax.f32 %v283, 0.0
    %v288 = vmax.f32 %v284, 0.0
    %v289 = vld [vmem:[%s2] sm:$0xff]
    %v290 = vld [vmem:[%s2 + $0x8] sm:$0xff]
    %v291 = vld [vmem:[%s2 + $0x10] sm:$0xff]
    %v292 = vld [vmem:[%s2 + $0x18] sm:$0xff]
    %v293 = vadd.f32 %v285, 1e-05
    %v294 = vadd.f32 %v286, 1e-05
    %v295 = vadd.f32 %v287, 1e-05
    %v296 = vadd.f32 %v288, 1e-05
    %v297 = vrsqrt.pop %v293
    %v298 = vrsqrt.pop %v294
    %v299 = vrsqrt.pop %v295
    %v300 = vrsqrt.pop %v296
    %v301 = vmul.f32 %v289, %v297
    %v302 = vmul.f32 %v290, %v298
    %v303 = vmul.f32 %v291, %v299
    %v304 = vmul.f32 %v292, %v300
    %v305 = vld [vmem:[%s3] sm:$0xff]
    %v306 = vld [vmem:[%s3 + $0x8] sm:$0xff]
    %v307 = vld [vmem:[%s3 + $0x10] sm:$0xff]
    %v308 = vld [vmem:[%s3 + $0x18] sm:$0xff]
    %v309 = vmul.f32 %v233, %v301
    %v310 = vmul.f32 %v234, %v302
    %v311 = vmul.f32 %v235, %v303
    %v312 = vmul.f32 %v236, %v304
    %v313 = vsub.f32 %v305, %v309
    %v314 = vsub.f32 %v306, %v310
    %v315 = vsub.f32 %v307, %v311
    %v316 = vsub.f32 %v308, %v312
    %318 = vset.pattern.permute.xlu0 0
    %319 = vperm.xlu0 %318, %v301
    %v320 = vpop.permute.xlu0 %319
    %323 = vset.pattern.permute.xlu0 0
    %324 = vperm.xlu0 %323, %v302
    %v325 = vpop.permute.xlu0 %324
    %328 = vset.pattern.permute.xlu0 0
    %329 = vperm.xlu0 %328, %v303
    %v330 = vpop.permute.xlu0 %329
    %333 = vset.pattern.permute.xlu0 0
    %334 = vperm.xlu0 %333, %v304
    %v335 = vpop.permute.xlu0 %334
    %v337 = vmul.f32 %v142, %v320
    %v338 = vmul.f32 %v144, %v320
    %v339 = vmul.f32 %v195, %v320
    %v340 = vmul.f32 %v197, %v320
    %v341 = vmul.f32 %v146, %v325
    %v342 = vmul.f32 %v148, %v325
    %v343 = vmul.f32 %v199, %v325
    %v344 = vmul.f32 %v201, %v325
    %v345 = vmul.f32 %v152, %v330
    %v346 = vmul.f32 %v154, %v330
    %v347 = vmul.f32 %v205, %v330
    %v348 = vmul.f32 %v207, %v330
    %v349 = vmul.f32 %v156, %v335
    %v350 = vmul.f32 %v158, %v335
    %v351 = vmul.f32 %v209, %v335
    %v352 = vmul.f32 %v211, %v335
    %354 = vset.pattern.permute.xlu0 0
    %355 = vperm.xlu0 %354, %v313
    %v356 = vpop.permute.xlu0 %355
    %359 = vset.pattern.permute.xlu0 0
    %360 = vperm.xlu0 %359, %v314
    %v361 = vpop.permute.xlu0 %360
    %364 = vset.pattern.permute.xlu0 0
    %365 = vperm.xlu0 %364, %v315
    %v366 = vpop.permute.xlu0 %365
    %369 = vset.pattern.permute.xlu0 0
    %370 = vperm.xlu0 %369, %v316
    %v371 = vpop.permute.xlu0 %370
    %v373 = vadd.f32 %v337, %v356
    %v374 = vadd.f32 %v338, %v356
    %v375 = vadd.f32 %v339, %v356
    %v376 = vadd.f32 %v340, %v356
    %v377 = vadd.f32 %v341, %v361
    %v378 = vadd.f32 %v342, %v361
    %v379 = vadd.f32 %v343, %v361
    %v380 = vadd.f32 %v344, %v361
    %v381 = vadd.f32 %v345, %v366
    %v382 = vadd.f32 %v346, %v366
    %v383 = vadd.f32 %v347, %v366
    %v384 = vadd.f32 %v348, %v366
    %v385 = vadd.f32 %v349, %v371
    %v386 = vadd.f32 %v350, %v371
    %v387 = vadd.f32 %v351, %v371
    %v388 = vadd.f32 %v352, %v371
    %v389 = vmax.f32 %v373, 0.0
    %v390 = vmax.f32 %v374, 0.0
    %v391 = vmax.f32 %v375, 0.0
    %v392 = vmax.f32 %v376, 0.0
    %v393 = vmax.f32 %v377, 0.0
    %v394 = vmax.f32 %v378, 0.0
    %v395 = vmax.f32 %v379, 0.0
    %v396 = vmax.f32 %v380, 0.0
    %v397 = vmax.f32 %v381, 0.0
    %v398 = vmax.f32 %v382, 0.0
    %v399 = vmax.f32 %v383, 0.0
    %v400 = vmax.f32 %v384, 0.0
    %v401 = vmax.f32 %v385, 0.0
    %v402 = vmax.f32 %v386, 0.0
    %v403 = vmax.f32 %v387, 0.0
    %v404 = vmax.f32 %v388, 0.0
    %v405 = vpack.c.bf16 %v393, %v389
    %v406 = vpack.c.bf16 %v394, %v390
    %v407 = vpack.c.bf16 %v395, %v391
    %v408 = vpack.c.bf16 %v396, %v392
    %v409 = vpack.c.bf16 %v401, %v397
    %v410 = vpack.c.bf16 %v402, %v398
    %v411 = vpack.c.bf16 %v403, %v399
    %v412 = vpack.c.bf16 %v404, %v400
    %v413 = vld [vmem:[%s4] sm:$0xf]
    %v414 = vld [vmem:[%s4 + $0x4] sm:$0xf]
    %v417 = vunpack.c.l.b16 %v413
    %v418 = vunpack.c.l.b16 %v414
    %v419 = vpack.c.b16 %v418, %v417
    %v421 = vsel %vm100, %v419, 0
    %423 = vmatprep.subr.bf16.mxu0 %v406
    %424 = vmatpush1.bf16.msra.mxu0 %v405
    %425 = vmatprep.subr.bf16.mxu0 %v410
    %426 = vmatpush1.bf16.msra.mxu0 %v409
    %427 = vmatprep.subr.bf16.mxu0 0
    %428 = vmatpush1.bf16.msra.mxu0 0
    %429 = vmatprep.subr.bf16.mxu0 0
    %430 = vmatpush1.bf16.msra.mxu0 0
    %431 = vmatprep.subr.bf16.mxu0 0
    %432 = vmatpush1.bf16.msra.mxu0 0
    %433 = vmatprep.subr.bf16.mxu0 0
    %434 = vmatpush1.bf16.msra.mxu0 0
    %435 = vmatprep.subr.bf16.mxu0 0
    %436 = vmatpush1.bf16.msra.mxu0 0
    %437 = vmatprep.subr.bf16.mxu0 0
    %438 = vmatpush1.bf16.msra.mxu0 0
    %439 = vmatprep.subr.bf16.mxu0 0
    %440 = vmatpush1.bf16.msra.mxu0 0
    %441 = vmatprep.subr.bf16.mxu0 0
    %442 = vmatpush1.bf16.msra.mxu0 0
    %443 = vmatprep.subr.bf16.mxu0 0
    %444 = vmatpush1.bf16.msra.mxu0 0
    %445 = vmatprep.subr.bf16.mxu0 0
    %446 = vmatpush1.bf16.msra.mxu0 0
    %447 = vmatprep.subr.bf16.mxu0 0
    %448 = vmatpush1.bf16.msra.mxu0 0
    %449 = vmatprep.subr.bf16.mxu0 0
    %450 = vmatpush1.bf16.msra.mxu0 0
    %451 = vmatprep.subr.bf16.mxu0 0
    %452 = vmatpush1.bf16.msra.mxu0 0
    %453 = vmatprep.subr.bf16.mxu0 0
    %454 = vmatpush1.bf16.msra.mxu0 0
    %455 = vmatprep.mubr.bf16.mxu0 0
    %456 = vmatmul.mubr.bf16.gmra.mrb[0].mxu0 %v421
    %v457 = vpop.f32.mrb[0].mxu0
    %v458 = vadd.f32 0.0, %v457
    %v459 = vpop.f32.mrb[0].mxu0
    %v460 = vadd.f32 0.0, %v459
    %v461 = vpop.f32.mrb[0].mxu0
    %v462 = vadd.f32 0.0, %v461
    %v463 = vpop.f32.mrb[0].mxu0
    %v464 = vadd.f32 0.0, %v463
    %465 = vdwg.mxu0
    %466 = vmatprep.subr.bf16.mxu0 %v408
    %467 = vmatpush1.bf16.msra.mxu0 %v407
    %468 = vmatprep.subr.bf16.mxu0 %v412
    %469 = vmatpush1.bf16.msra.mxu0 %v411
    %470 = vmatprep.subr.bf16.mxu0 0
    %471 = vmatpush1.bf16.msra.mxu0 0
    %472 = vmatprep.subr.bf16.mxu0 0
    %473 = vmatpush1.bf16.msra.mxu0 0
    %474 = vmatprep.subr.bf16.mxu0 0
    %475 = vmatpush1.bf16.msra.mxu0 0
    %476 = vmatprep.subr.bf16.mxu0 0
    %477 = vmatpush1.bf16.msra.mxu0 0
    %478 = vmatprep.subr.bf16.mxu0 0
    %479 = vmatpush1.bf16.msra.mxu0 0
    %480 = vmatprep.subr.bf16.mxu0 0
    %481 = vmatpush1.bf16.msra.mxu0 0
    %482 = vmatprep.subr.bf16.mxu0 0
    %483 = vmatpush1.bf16.msra.mxu0 0
    %484 = vmatprep.subr.bf16.mxu0 0
    %485 = vmatpush1.bf16.msra.mxu0 0
    %486 = vmatprep.subr.bf16.mxu0 0
    %487 = vmatpush1.bf16.msra.mxu0 0
    %488 = vmatprep.subr.bf16.mxu0 0
    %489 = vmatpush1.bf16.msra.mxu0 0
    %490 = vmatprep.subr.bf16.mxu0 0
    %491 = vmatpush1.bf16.msra.mxu0 0
    %492 = vmatprep.subr.bf16.mxu0 0
    %493 = vmatpush1.bf16.msra.mxu0 0
    %494 = vmatprep.subr.bf16.mxu0 0
    %495 = vmatpush1.bf16.msra.mxu0 0
    %496 = vmatprep.subr.bf16.mxu0 0
    %497 = vmatpush1.bf16.msra.mxu0 0
    %498 = vmatprep.mubr.bf16.mxu0 0
    %499 = vmatmul.mubr.bf16.gmra.mrb[0].mxu0 %v421
    %v500 = vpop.f32.mrb[0].mxu0
    %v501 = vadd.f32 0.0, %v500
    %v502 = vpop.f32.mrb[0].mxu0
    %v503 = vadd.f32 0.0, %v502
    %v504 = vpop.f32.mrb[0].mxu0
    %v505 = vadd.f32 0.0, %v504
    %v506 = vpop.f32.mrb[0].mxu0
    %v507 = vadd.f32 0.0, %v506
    %508 = vdwg.mxu0
    %v509 = vadd.f32 %v458, %v460
    %v510 = vadd.f32 %v509, %v501
    %v511 = vadd.f32 %v510, %v503
    %512 = vadd.xlane.f32.xlu0 %v511
    %v513 = vpop.xlane.xlu0 %512
    %v514 = vadd.f32 %v462, %v464
    %v515 = vadd.f32 %v514, %v505
    %v516 = vadd.f32 %v515, %v507
    %517 = vadd.xlane.f32.xlu0 %v516
    %v518 = vpop.xlane.xlu0 %517
    %v519 = vmul.f32 %v513, 0.001953125
    %v520 = vmul.f32 %v518, 0.001953125
    %v521 = vmul.f32 %v458, %v458
    %v522 = vmul.f32 %v460, %v460
    %v523 = vmul.f32 %v501, %v501
    %v524 = vmul.f32 %v503, %v503
    %v525 = vmul.f32 %v462, %v462
    %v526 = vmul.f32 %v464, %v464
    %v527 = vmul.f32 %v505, %v505
    %v528 = vmul.f32 %v507, %v507
    %v529 = vadd.f32 %v521, %v522
    %v530 = vadd.f32 %v529, %v523
    %v531 = vadd.f32 %v530, %v524
    %532 = vadd.xlane.f32.xlu0 %v531
    %v533 = vpop.xlane.xlu0 %532
    %v534 = vadd.f32 %v525, %v526
    %v535 = vadd.f32 %v534, %v527
    %v536 = vadd.f32 %v535, %v528
    %537 = vadd.xlane.f32.xlu0 %v536
    %v538 = vpop.xlane.xlu0 %537
    %v539 = vmul.f32 %v533, 0.001953125
    %v540 = vmul.f32 %v538, 0.001953125
    %v541 = vmul.f32 %v519, %v519
    %v542 = vmul.f32 %v520, %v520
    %v543 = vsub.f32 %v539, %v541
    %v544 = vsub.f32 %v540, %v542
    %v545 = vmax.f32 %v543, 0.0
    %v546 = vmax.f32 %v544, 0.0
    %v547 = vld [vmem:[%s5] sm:$0xff]
    %v548 = vld [vmem:[%s5 + $0x8] sm:$0xff]
    %v549 = vadd.f32 %v545, 1e-05
    %v550 = vadd.f32 %v546, 1e-05
    %v551 = vrsqrt.pop %v549
    %v552 = vrsqrt.pop %v550
    %v553 = vmul.f32 %v547, %v551
    %v554 = vmul.f32 %v548, %v552
    %v555 = vld [vmem:[%s6] sm:$0xff]
    %v556 = vld [vmem:[%s6 + $0x8] sm:$0xff]
    %v557 = vmul.f32 %v519, %v553
    %v558 = vmul.f32 %v520, %v554
    %v559 = vsub.f32 %v555, %v557
    %v560 = vsub.f32 %v556, %v558
    %562 = vset.pattern.permute.xlu0 0
    %563 = vperm.xlu0 %562, %v553
    %v564 = vpop.permute.xlu0 %563
    %567 = vset.pattern.permute.xlu0 0
    %568 = vperm.xlu0 %567, %v554
    %v569 = vpop.permute.xlu0 %568
    %v571 = vmul.f32 %v458, %v564
    %v572 = vmul.f32 %v460, %v564
    %v573 = vmul.f32 %v501, %v564
    %v574 = vmul.f32 %v503, %v564
    %v575 = vmul.f32 %v462, %v569
    %v576 = vmul.f32 %v464, %v569
    %v577 = vmul.f32 %v505, %v569
    %v578 = vmul.f32 %v507, %v569
    %580 = vset.pattern.permute.xlu0 0
    %581 = vperm.xlu0 %580, %v559
    %v582 = vpop.permute.xlu0 %581
    %585 = vset.pattern.permute.xlu0 0
    %586 = vperm.xlu0 %585, %v560
    %v587 = vpop.permute.xlu0 %586
    %v589 = vadd.f32 %v571, %v582
    %v590 = vadd.f32 %v572, %v582
    %v591 = vadd.f32 %v573, %v582
    %v592 = vadd.f32 %v574, %v582
    %v593 = vadd.f32 %v575, %v587
    %v594 = vadd.f32 %v576, %v587
    %v595 = vadd.f32 %v577, %v587
    %v596 = vadd.f32 %v578, %v587
    %v597 = vmax.f32 %v589, 0.0
    %v598 = vmax.f32 %v590, 0.0
    %v599 = vmax.f32 %v591, 0.0
    %v600 = vmax.f32 %v592, 0.0
    %v601 = vmax.f32 %v593, 0.0
    %v602 = vmax.f32 %v594, 0.0
    %v603 = vmax.f32 %v595, 0.0
    %v604 = vmax.f32 %v596, 0.0
    %v605 = vpack.c.bf16 %v601, %v597
    %v606 = vpack.c.bf16 %v602, %v598
    %v607 = vpack.c.bf16 %v603, %v599
    %v608 = vpack.c.bf16 %v604, %v600
    %v609 = vld [vmem:[%s7] sm:$0xf]
    %v610 = vld [vmem:[%s7 + $0x4] sm:$0xf]
    %v611 = vld [vmem:[%s8] sm:$0xff]
    %v612 = vld [vmem:[%s8 + $0x8] sm:$0xff]
    %614 = vset.pattern.permute.xlu0 0
    %615 = vperm.xlu0 %614, %v611
    %v616 = vpop.permute.xlu0 %615
    %619 = vset.pattern.permute.xlu0 0
    %620 = vperm.xlu0 %619, %v612
    %v621 = vpop.permute.xlu0 %620
    %v625 = vunpack.c.l.b16 %v609
    %v626 = vunpack.c.l.b16 %v610
    %v627 = vpack.c.b16 %v626, %v625
    %vm628 = vcmask 130048
    %v630 = vsel %vm628, %v627, 0
    %632 = vmatprep.subr.bf16.mxu0 %v606
    %633 = vmatpush1.bf16.msra.mxu0 %v605
    %634 = vmatprep.subr.bf16.mxu0 0
    %635 = vmatpush1.bf16.msra.mxu0 0
    %636 = vmatprep.subr.bf16.mxu0 0
    %637 = vmatpush1.bf16.msra.mxu0 0
    %638 = vmatprep.subr.bf16.mxu0 0
    %639 = vmatpush1.bf16.msra.mxu0 0
    %640 = vmatprep.subr.bf16.mxu0 0
    %641 = vmatpush1.bf16.msra.mxu0 0
    %642 = vmatprep.subr.bf16.mxu0 0
    %643 = vmatpush1.bf16.msra.mxu0 0
    %644 = vmatprep.subr.bf16.mxu0 0
    %645 = vmatpush1.bf16.msra.mxu0 0
    %646 = vmatprep.subr.bf16.mxu0 0
    %647 = vmatpush1.bf16.msra.mxu0 0
    %648 = vmatprep.subr.bf16.mxu0 0
    %649 = vmatpush1.bf16.msra.mxu0 0
    %650 = vmatprep.subr.bf16.mxu0 0
    %651 = vmatpush1.bf16.msra.mxu0 0
    %652 = vmatprep.subr.bf16.mxu0 0
    %653 = vmatpush1.bf16.msra.mxu0 0
    %654 = vmatprep.subr.bf16.mxu0 0
    %655 = vmatpush1.bf16.msra.mxu0 0
    %656 = vmatprep.subr.bf16.mxu0 0
    %657 = vmatpush1.bf16.msra.mxu0 0
    %658 = vmatprep.subr.bf16.mxu0 0
    %659 = vmatpush1.bf16.msra.mxu0 0
    %660 = vmatprep.subr.bf16.mxu0 0
    %661 = vmatpush1.bf16.msra.mxu0 0
    %662 = vmatprep.subr.bf16.mxu0 0
    %663 = vmatpush1.bf16.msra.mxu0 0
    %664 = vmatprep.mubr.bf16.mxu0 0
    %665 = vmatmul.mubr.bf16.gmra.mrb[0].mxu0 %v630
    %v666 = vpop.f32.mrb[0].mxu0
    %v667 = vadd.f32 %v616, %v666
    %v668 = vpop.f32.mrb[0].mxu0
    %v669 = vadd.f32 %v616, %v668
    %v670 = vpop.f32.mrb[0].mxu0
    %v671 = vadd.f32 %v621, %v670
    %v672 = vpop.f32.mrb[0].mxu0
    %v673 = vadd.f32 %v621, %v672
    %674 = vdwg.mxu0
    %675 = vmatprep.subr.bf16.mxu0 %v608
    %676 = vmatpush1.bf16.msra.mxu0 %v607
    %677 = vmatprep.subr.bf16.mxu0 0
    %678 = vmatpush1.bf16.msra.mxu0 0
    %679 = vmatprep.subr.bf16.mxu0 0
    %680 = vmatpush1.bf16.msra.mxu0 0
    %681 = vmatprep.subr.bf16.mxu0 0
    %682 = vmatpush1.bf16.msra.mxu0 0
    %683 = vmatprep.subr.bf16.mxu0 0
    %684 = vmatpush1.bf16.msra.mxu0 0
    %685 = vmatprep.subr.bf16.mxu0 0
    %686 = vmatpush1.bf16.msra.mxu0 0
    %687 = vmatprep.subr.bf16.mxu0 0
    %688 = vmatpush1.bf16.msra.mxu0 0
    %689 = vmatprep.subr.bf16.mxu0 0
    %690 = vmatpush1.bf16.msra.mxu0 0
    %691 = vmatprep.subr.bf16.mxu0 0
    %692 = vmatpush1.bf16.msra.mxu0 0
    %693 = vmatprep.subr.bf16.mxu0 0
    %694 = vmatpush1.bf16.msra.mxu0 0
    %695 = vmatprep.subr.bf16.mxu0 0
    %696 = vmatpush1.bf16.msra.mxu0 0
    %697 = vmatprep.subr.bf16.mxu0 0
    %698 = vmatpush1.bf16.msra.mxu0 0
    %699 = vmatprep.subr.bf16.mxu0 0
    %700 = vmatpush1.bf16.msra.mxu0 0
    %701 = vmatprep.subr.bf16.mxu0 0
    %702 = vmatpush1.bf16.msra.mxu0 0
    %703 = vmatprep.subr.bf16.mxu0 0
    %704 = vmatpush1.bf16.msra.mxu0 0
    %705 = vmatprep.subr.bf16.mxu0 0
    %706 = vmatpush1.bf16.msra.mxu0 0
    %707 = vmatprep.mubr.bf16.mxu0 0
    %708 = vmatmul.mubr.bf16.gmra.mrb[0].mxu0 %v630
    %v709 = vpop.f32.mrb[0].mxu0
    %v710 = vadd.f32 %v616, %v709
    %v711 = vpop.f32.mrb[0].mxu0
    %v712 = vadd.f32 %v616, %v711
    %v713 = vpop.f32.mrb[0].mxu0
    %v714 = vadd.f32 %v621, %v713
    %v715 = vpop.f32.mrb[0].mxu0
    %v716 = vadd.f32 %v621, %v715
    %717 = vdwg.mxu0
    %718 = vst [vmem:[#allocation2] sm:$0xff] %v667
    %719 = vst [vmem:[#allocation2 + $0x8] sm:$0xff] %v669
    %720 = vst [vmem:[#allocation2 + $0x10] sm:$0xff] %v710
    %721 = vst [vmem:[#allocation2 + $0x18] sm:$0xff] %v712
    %722 = vst [vmem:[#allocation2 + $0x20] sm:$0xff] %v671
    %723 = vst [vmem:[#allocation2 + $0x28] sm:$0xff] %v673
    %724 = vst [vmem:[#allocation2 + $0x30] sm:$0xff] %v714
    %725 = vst [vmem:[#allocation2 + $0x38] sm:$0xff] %v716
    %v726 = vlaneseq
    %v727 = vshrl.u32 %v726, 7
    %v728 = vadd.s32 %v727, 8
    %vm729 = vcmp.lt.s32.totalorder %v727, 12
    %vm730 = vcmp.lt.s32.totalorder %v728, 12
    %v731 = vsel %vm729, %v667, -inf
    %v732 = vsel %vm729, %v669, -inf
    %v733 = vsel %vm729, %v710, -inf
    %v734 = vsel %vm729, %v712, -inf
    %v735 = vsel %vm730, %v671, -inf
    %v736 = vsel %vm730, %v673, -inf
    %v737 = vsel %vm730, %v714, -inf
    %v738 = vsel %vm730, %v716, -inf
    %v739 = vmax.f32 %v731, %v735
    %v740 = vrot.slane %v739, 4
    %v741 = vmax.f32 %v739, %v740
    %v742 = vrot.slane %v741, 2
    %v743 = vmax.f32 %v741, %v742
    %v744 = vrot.slane %v743, 1
    %v745 = vmax.f32 %v743, %v744
    %v746 = vmax.f32 %v732, %v736
    %v747 = vrot.slane %v746, 4
    %v748 = vmax.f32 %v746, %v747
    %v749 = vrot.slane %v748, 2
    %v750 = vmax.f32 %v748, %v749
    %v751 = vrot.slane %v750, 1
    %v752 = vmax.f32 %v750, %v751
    %v753 = vmax.f32 %v733, %v737
    %v754 = vrot.slane %v753, 4
    %v755 = vmax.f32 %v753, %v754
    %v756 = vrot.slane %v755, 2
    %v757 = vmax.f32 %v755, %v756
    %v758 = vrot.slane %v757, 1
    %v759 = vmax.f32 %v757, %v758
    %v760 = vmax.f32 %v734, %v738
    %v761 = vrot.slane %v760, 4
    %v762 = vmax.f32 %v760, %v761
    %v763 = vrot.slane %v762, 2
    %v764 = vmax.f32 %v762, %v763
    %v765 = vrot.slane %v764, 1
    %v766 = vmax.f32 %v764, %v765
    %vm767 = vcmp.eq.f32.partialorder %v731, %v745
    %vm768 = vcmp.eq.f32.partialorder %v732, %v752
    %vm769 = vcmp.eq.f32.partialorder %v733, %v759
    %vm770 = vcmp.eq.f32.partialorder %v734, %v766
    %vm771 = vcmp.eq.f32.partialorder %v735, %v745
    %vm772 = vcmp.eq.f32.partialorder %v736, %v752
    %vm773 = vcmp.eq.f32.partialorder %v737, %v759
    %vm774 = vcmp.eq.f32.partialorder %v738, %v766
    %vm775 = vmand %vm729, %vm767
    %vm776 = vmand %vm729, %vm768
    %vm777 = vmand %vm729, %vm769
    %vm778 = vmand %vm729, %vm770
    %vm779 = vmand %vm730, %vm771
    %vm780 = vmand %vm730, %vm772
    %vm781 = vmand %vm730, %vm773
    %vm782 = vmand %vm730, %vm774
    %v783 = vsel %vm775, %v727, 16
    %v784 = vsel %vm776, %v727, 16
    %v785 = vsel %vm777, %v727, 16
    %v786 = vsel %vm778, %v727, 16
    %v787 = vsel %vm779, %v728, 16
    %v788 = vsel %vm780, %v728, 16
    %v789 = vsel %vm781, %v728, 16
    %v790 = vsel %vm782, %v728, 16
    %vm791 = vcmp.lt.s32.totalorder %v783, %v787
    %v792 = vsel %vm791, %v783, %v787
    %v793 = vrot.slane %v792, 4
    %vm794 = vcmp.lt.s32.totalorder %v792, %v793
    %v795 = vsel %vm794, %v792, %v793
    %v796 = vrot.slane %v795, 2
    %vm797 = vcmp.lt.s32.totalorder %v795, %v796
    %v798 = vsel %vm797, %v795, %v796
    %v799 = vrot.slane %v798, 1
    %vm800 = vcmp.lt.s32.totalorder %v798, %v799
    %v801 = vsel %vm800, %v798, %v799
    %vm802 = vcmp.lt.s32.totalorder %v784, %v788
    %v803 = vsel %vm802, %v784, %v788
    %v804 = vrot.slane %v803, 4
    %vm805 = vcmp.lt.s32.totalorder %v803, %v804
    %v806 = vsel %vm805, %v803, %v804
    %v807 = vrot.slane %v806, 2
    %vm808 = vcmp.lt.s32.totalorder %v806, %v807
    %v809 = vsel %vm808, %v806, %v807
    %v810 = vrot.slane %v809, 1
    %vm811 = vcmp.lt.s32.totalorder %v809, %v810
    %v812 = vsel %vm811, %v809, %v810
    %vm813 = vcmp.lt.s32.totalorder %v785, %v789
    %v814 = vsel %vm813, %v785, %v789
    %v815 = vrot.slane %v814, 4
    %vm816 = vcmp.lt.s32.totalorder %v814, %v815
    %v817 = vsel %vm816, %v814, %v815
    %v818 = vrot.slane %v817, 2
    %vm819 = vcmp.lt.s32.totalorder %v817, %v818
    %v820 = vsel %vm819, %v817, %v818
    %v821 = vrot.slane %v820, 1
    %vm822 = vcmp.lt.s32.totalorder %v820, %v821
    %v823 = vsel %vm822, %v820, %v821
    %vm824 = vcmp.lt.s32.totalorder %v786, %v790
    %v825 = vsel %vm824, %v786, %v790
    %v826 = vrot.slane %v825, 4
    %vm827 = vcmp.lt.s32.totalorder %v825, %v826
    %v828 = vsel %vm827, %v825, %v826
    %v829 = vrot.slane %v828, 2
    %vm830 = vcmp.lt.s32.totalorder %v828, %v829
    %v831 = vsel %vm830, %v828, %v829
    %v832 = vrot.slane %v831, 1
    %vm833 = vcmp.lt.s32.totalorder %v831, %v832
    %v834 = vsel %vm833, %v831, %v832
    %v839 = vcombine.low %v745, %v752
    %v840 = vcombine.low %v759, %v766
    %v842 = vunpack.c.l.s4 1966171168
    %v843 = vunpack.c.0.s8 %v842
    %v844 = vlaneseq
    %v845 = vshrl.u32 %v844, 7
    %v846 = vsub.s32 %v843, %v845
    %v847 = vrot.slane %v839, %v846
    %v849 = vunpack.c.l.s4 1966171168
    %v850 = vunpack.c.0.s8 %v849
    %v851 = vlaneseq
    %v852 = vshrl.u32 %v851, 7
    %v853 = vsub.s32 %v850, %v852
    %v854 = vrot.slane %v840, %v853
    %v855 = vcombine.low %v847, %v854
    %v857 = vunpack.c.l.s4 1966171168
    %v858 = vunpack.c.0.s8 %v857
    %v859 = vlaneseq
    %v860 = vshrl.u32 %v859, 7
    %v861 = vsub.s32 %v858, %v860
    %v862 = vrot.slane %v855, %v861
    %v864 = vlaneseq
    %vm865 = vcmp.ge.s32.totalorder %v864, 0
    %vm866 = vcmp.lt.s32.totalorder %v864, 512
    %vm867 = vmand %vm865, %vm866
    %868 = vst.msk [vmem:[#allocation4] sm:$0xf] %vm867, %v862
    %v869 = vcombine.low %v801, %v812
    %v870 = vcombine.low %v823, %v834
    %v872 = vunpack.c.l.s4 1966171168
    %v873 = vunpack.c.0.s8 %v872
    %v874 = vlaneseq
    %v875 = vshrl.u32 %v874, 7
    %v876 = vsub.s32 %v873, %v875
    %v877 = vrot.slane %v869, %v876
    %v879 = vunpack.c.l.s4 1966171168
    %v880 = vunpack.c.0.s8 %v879
    %v881 = vlaneseq
    %v882 = vshrl.u32 %v881, 7
    %v883 = vsub.s32 %v880, %v882
    %v884 = vrot.slane %v870, %v883
    %v885 = vcombine.low %v877, %v884
    %v887 = vunpack.c.l.s4 1966171168
    %v888 = vunpack.c.0.s8 %v887
    %v889 = vlaneseq
    %v890 = vshrl.u32 %v889, 7
    %v891 = vsub.s32 %v888, %v890
    %v892 = vrot.slane %v885, %v891
    %893 = vst.msk [vmem:[#allocation6] sm:$0xf] %vm867, %v892
    // Predicated region
    $region38: #{tpu_custom_call.1} parent=1 // pred_check
      _
    $region39: #{tpu_custom_call.1} parent=1 // pred_check_branch
      %895 = sbr.rel (0) target = $region41
    $region40: #{tpu_custom_call.1} parent=1 // pred_region
      %s897 = ssub.s32 1024, 1024
      %898 = vsyncadd [#allocation3], %s897
      %s899 = sshll.u32 [#allocation2], 4
      %s900 = int_to_ptr.vmem [resolvable:$true] %s899
      %905 = dma.vmem_to_hbm [thread:$0]  %s900, 1024, %s9, [#allocation3], 512, 512, 32
    $region41: #{tpu_custom_call.1} parent=1 // pred_fallthru
      _
    // Predicated region
    $region42: #{tpu_custom_call.1} parent=1 // pred_check
      _
    $region43: #{tpu_custom_call.1} parent=1 // pred_check_branch
      %907 = sbr.rel (0) target = $region45
    $region44: #{tpu_custom_call.1} parent=1 // pred_region
      %s909 = ssub.s32 64, 64
      %910 = vsyncadd [#allocation5], %s909
      %s912 = sshll.u32 [#allocation4], 4
      %s913 = int_to_ptr.vmem [resolvable:$true] %s912
      %915 = dma.vmem_to_hbm [thread:$0]  %s913, 64, %s10, [#allocation5]
    $region45: #{tpu_custom_call.1} parent=1 // pred_fallthru
      _
    // Predicated region
    $region46: #{tpu_custom_call.1} parent=1 // pred_check
      _
    $region47: #{tpu_custom_call.1} parent=1 // pred_check_branch
      %917 = sbr.rel (0) target = $region49
    $region48: #{tpu_custom_call.1} parent=1 // pred_region
      %s919 = ssub.s32 64, 64
      %920 = vsyncadd [#allocation5], %s919
      %s922 = sshll.u32 [#allocation6], 4
      %s923 = int_to_ptr.vmem [resolvable:$true] %s922
      %925 = dma.vmem_to_hbm [thread:$0]  %s923, 64, %s11, [#allocation5]
    $region49: #{tpu_custom_call.1} parent=1 // pred_fallthru
      _
    // Predicated region
    $region50: #{tpu_custom_call.1} parent=1 // pred_check
      _
    $region51: #{tpu_custom_call.1} parent=1 // pred_check_branch
      %927 = sbr.rel (0) target = $region53
    $region52: #{tpu_custom_call.1} parent=1 // pred_region
      %928 = dma.done [#allocation3], 1024
    $region53: #{tpu_custom_call.1} parent=1 // pred_fallthru
      _
    // Predicated region
    $region54: #{tpu_custom_call.1} parent=1 // pred_check
      _
    $region55: #{tpu_custom_call.1} parent=1 // pred_check_branch
      %930 = sbr.rel (0) target = $region57
    $region56: #{tpu_custom_call.1} parent=1 // pred_region
      %931 = dma.done [#allocation5], 64
    $region57: #{tpu_custom_call.1} parent=1 // pred_fallthru
      _
    // Predicated region
    $region58: #{tpu_custom_call.1} parent=1 // pred_check
      _
    $region59: #{tpu_custom_call.1} parent=1 // pred_check_branch
      %933 = sbr.rel (0) target = $region61
    $region60: #{tpu_custom_call.1} parent=1 // pred_region
      %934 = dma.done [#allocation5], 64
    $region61: #{tpu_custom_call.1} parent=1 // pred_fallthru
      _
    %935 = vsyncpa [#allocation3], 1
    %936 = vsyncpa [#allocation5], 1

</llo_original>
